<compile_context>
chip_gen: v7x
topology: tpu7x:2x2x1
jax: 0.10.0
libtpu: 0.0.40
codegen_flags: <defaults>
</compile_context>

<pallas_src>
import math

import jax
import jax.numpy as jnp
from jax.experimental import pallas as pl
from jax.experimental.pallas import tpu as pltpu

OBS_DIM = 39
# boolean mask in ProMPWrapper.forward selects obs indices 4..6 and 36..38
SEL_IDX = (4, 5, 6, 36, 37, 38)
IN_DIM = len(SEL_IDX)               # 6
HIDDEN = 32                         # policy MLP hidden width
N_BASIS = 5                         # ProMP basis functions
ACTION_DIM = 4                      # pro_mp.action_dim (size of log_std)
WEIGHT_DIM = N_BASIS * ACTION_DIM   # 20 ProMP weights per sample
N_STEPS = 8                         # trajectory length
DT = 0.02
TA = N_STEPS * ACTION_DIM           # 32 flattened trajectory features (t*A + a)

_SHIFT = math.log(math.expm1(1.0 - 1e-8))   # inverse_softplus(1 - 1e-8)


# ----------------------------------------------------------------------------
# Kernel (natural layout: batch on sublanes, features on lanes)
# ----------------------------------------------------------------------------
def _make_kernel(has_eps: bool, has_start: bool, compute_dtype):
    """Fused forward kernel specialized on which batch input streams exist."""

    def kernel(*refs):
        it = iter(refs)
        x_ref = next(it)                                   # [TB, 39] raw observations
        eps_ref = next(it) if has_eps else None            # [TB, 20] rsample noise
        start_ref = next(it) if has_start else None        # [TB, 4]  start positions
        w1_ref = next(it)                                  # [39, 32] (obs mask folded)
        b1_ref = next(it)                                  # [1, 32]
        w2_ref = next(it)                                  # [32, 32]
        b2_ref = next(it)                                  # [1, 32]
        p_pos_ref = next(it)                               # [32, 32] wmu @ pos_proj
        p_vel_ref = next(it)                               # [32, 32] wmu @ vel_proj
        bias_pos_ref = next(it)                            # [1, 32]  bmu @ pos_proj
        bias_vel_ref = next(it)                            # [1, 32]  bmu @ vel_proj
        q_pos_ref = next(it) if has_eps else None          # [20, 32] w_std-scaled pos_proj
        q_vel_ref = next(it) if has_eps else None          # [20, 32] w_std-scaled vel_proj
        e_pos_ref = next(it) if has_start else None        # [4, 32]  start expansion (0/1)
        pos_ref = next(it)                                 # [TB, 32] out: des_pos flat
        vel_ref = next(it)                                 # [TB, 32] out: des_vel flat

        x = x_ref[...].astype(compute_dtype)
        h1 = jnp.tanh(jnp.dot(x, w1_ref[...],
                              preferred_element_type=jnp.float32) + b1_ref[...])
        h2 = jnp.tanh(jnp.dot(h1.astype(compute_dtype), w2_ref[...],
                              preferred_element_type=jnp.float32) + b2_ref[...])
        h2c = h2.astype(compute_dtype)
        pos = jnp.dot(h2c, p_pos_ref[...],
                      preferred_element_type=jnp.float32) + bias_pos_ref[...]
        vel = jnp.dot(h2c, p_vel_ref[...],
                      preferred_element_type=jnp.float32) + bias_vel_ref[...]
        if has_eps:   # train path: rsample noise through the (std-scaled) projection
            e = eps_ref[...].astype(compute_dtype)
            pos = pos + jnp.dot(e, q_pos_ref[...], preferred_element_type=jnp.float32)
            vel = vel + jnp.dot(e, q_vel_ref[...], preferred_element_type=jnp.float32)
        if has_start:  # zero_start: f32 matmul against a 0/1 selection matrix (exact)
            pos = pos + jnp.dot(start_ref[...], e_pos_ref[...],
                                preferred_element_type=jnp.float32)
        pos_ref[...] = pos
        vel_ref[...] = vel

    return kernel


# ----------------------------------------------------------------------------
# Host-side, batch-independent parameter folding
# ----------------------------------------------------------------------------
def _fold_params(params, compute_dtype):
    hi = jax.lax.Precision.HIGHEST
    f32 = jnp.float32
    # fold the 39 -> 6 boolean mask into the first layer (zero rows elsewhere)
    w1_sel = jnp.zeros((OBS_DIM, HIDDEN), f32).at[jnp.array(SEL_IDX)].set(
        params['w1'].astype(f32))
    pos_proj = params['pos_proj'].astype(f32)                       # [20, 32]
    vel_proj = params['vel_proj'].astype(f32)                       # [20, 32]
    wmu = params['wmu'].astype(f32)
    bmu = params['bmu'].astype(f32)
    w_std = jax.nn.softplus(params['pre_std'].astype(f32) + _SHIFT) + 1e-8   # [1, 20]
    w_std_col = w_std.reshape(WEIGHT_DIM, 1)
    return dict(
        w1=w1_sel.astype(compute_dtype),
        b1=params['b1'].astype(f32),
        w2=params['w2'].astype(compute_dtype),
        b2=params['b2'].astype(f32),
        p_pos=jnp.dot(wmu, pos_proj, precision=hi).astype(compute_dtype),
        p_vel=jnp.dot(wmu, vel_proj, precision=hi).astype(compute_dtype),
        bias_pos=jnp.dot(bmu, pos_proj, precision=hi).astype(f32),
        bias_vel=jnp.dot(bmu, vel_proj, precision=hi).astype(f32),
        q_pos=(pos_proj * w_std_col).astype(compute_dtype),
        q_vel=(vel_proj * w_std_col).astype(compute_dtype),
        e_pos=jnp.tile(jnp.eye(ACTION_DIM, dtype=f32), (1, N_STEPS)),        # [4, 32]
    )


def _round_up(n, m):
    return -(-n // m) * m


def _choose_block_b(batch, cap=4096):
    """Batch tile for the grid.  Batch sits on the sublane axis, so a tile is either
    a multiple of 8 or the full batch.  Small batches run as a single full-size block
    (zero padding / overhead); large batches get >= 2 blocks so
    dimension_semantics=("parallel",) can use both v7x TensorCores, capped so the
    double-buffered working set stays well inside scoped VMEM on every generation."""
    cap = max(8, _round_up(int(cap), 8))
    if batch <= min(512, cap):
        return batch                                     # one block, block dim == B
    return min(cap, _round_up((batch + 1) // 2, 8))


# ----------------------------------------------------------------------------
# Synthesized module parameters (policy MLP + DeterministicProMP basis)
# ----------------------------------------------------------------------------
def _make_projections():
    """Deterministic ProMP Gaussian-RBF basis, packed as [WEIGHT_DIM, T*A] blocks."""
    t = jnp.linspace(0.0, 1.0, N_STEPS)
    centers = jnp.linspace(0.0, 1.0, N_BASIS)
    h = 1.0 / (2.0 * N_BASIS ** 2)
    diff = t[:, None] - centers[None, :]                     # [T, n]
    phi = jnp.exp(-diff ** 2 / (2.0 * h))
    norm = jnp.sum(phi, axis=1, keepdims=True)
    pos_feat = phi / norm                                    # [T, n]
    dphi = phi * (-diff / h)
    dnorm = jnp.sum(dphi, axis=1, keepdims=True)
    vel_feat = (dphi * norm - phi * dnorm) / (norm ** 2) / (N_STEPS * DT)

    eye_a = jnp.eye(ACTION_DIM, dtype=jnp.float32)

    def proj(feat):
        # proj[n*A + a, t*A + a'] = feat[t, n] * (a == a')
        p = jnp.einsum('tn,ab->natb', feat, eye_a)
        return p.reshape(WEIGHT_DIM, TA).astype(jnp.float32)

    return proj(pos_feat), proj(vel_feat)


def init_params(key):
    ks = jax.random.split(key, 4)

    def normal(k, shape, scale):
        return (scale * jax.random.normal(k, shape)).astype(jnp.float32)

    pos_proj, vel_proj = _make_projections()
    return dict(
        w1=normal(ks[0], (IN_DIM, HIDDEN), 1.0 / math.sqrt(IN_DIM)),
        b1=jnp.zeros((1, HIDDEN), jnp.float32),
        w2=normal(ks[1], (HIDDEN, HIDDEN), 1.0 / math.sqrt(HIDDEN)),
        b2=jnp.zeros((1, HIDDEN), jnp.float32),
        wmu=normal(ks[2], (HIDDEN, WEIGHT_DIM), 1.0 / math.sqrt(HIDDEN)),
        bmu=jnp.zeros((1, WEIGHT_DIM), jnp.float32),
        pre_std=jnp.zeros((1, WEIGHT_DIM), jnp.float32),
        # nn.Parameter(ch.normal(0, 0.01, (action_dim,)))
        log_std=(0.01 * jax.random.normal(ks[3], (ACTION_DIM,))).astype(jnp.float32),
        pos_proj=pos_proj,
        vel_proj=vel_proj,
    )


# ----------------------------------------------------------------------------
# Wrapper
# ----------------------------------------------------------------------------
def promp_wrapper_forward(x, params, eps=None, start_pos=None, train=True,
                          block_b=None, compute_dtype=jnp.float32,
                          expand_std=True):
    """Pallas implementation of ProMPWrapper.forward.

    x:         [B, 39] raw observations (the 39->6 mask is folded into w1, so no
               host-side gather/transpose is performed).
    eps:       [B, WEIGHT_DIM] rsample noise, required iff train=True.
    start_pos: [B, 1, ACTION_DIM] (or [B, ACTION_DIM]) or None.
    compute_dtype: dtype of the MXU matmul operands inside the kernel
               (f32 default; bf16 for MXU-native throughput, f32 accumulation).
    expand_std: True -> std returned as [B, T, A, A] (module semantics);
               False -> just the [A, A] diag (avoid materializing a parameter
               broadcast in HBM).

    Returns (des_pos [B, T, A], des_vel [B, T, A], std).
    """
    B = x.shape[0]
    if x.shape[-1] != OBS_DIM:
        raise ValueError(f"expected x of shape [B, {OBS_DIM}], got {x.shape}")
    has_eps = bool(train)
    has_start = start_pos is not None
    if has_eps and eps is None:
        raise ValueError("train=True requires rsample noise eps of shape [B, WEIGHT_DIM]")

    TB = _choose_block_b(B) if block_b is None else _choose_block_b(B, cap=block_b)
    n_blocks = pl.cdiv(B, TB)       # partial edge block handled by Pallas masking

    folded = _fold_params(params, compute_dtype)

    # batch-tiled streams: natural [B, feature] layout, batch on the sublane axis
    batch_args = [x]
    batch_specs = [pl.BlockSpec((TB, OBS_DIM), lambda i: (i, 0))]
    if has_eps:
        batch_args.append(eps.reshape(B, WEIGHT_DIM))
        batch_specs.append(pl.BlockSpec((TB, WEIGHT_DIM), lambda i: (i, 0)))
    if has_start:
        batch_args.append(start_pos.reshape(B, ACTION_DIM).astype(jnp.float32))
        batch_specs.append(pl.BlockSpec((TB, ACTION_DIM), lambda i: (i, 0)))

    param_names = ['w1', 'b1', 'w2', 'b2', 'p_pos', 'p_vel', 'bias_pos', 'bias_vel']
    if has_eps:
        param_names += ['q_pos', 'q_vel']
    if has_start:
        param_names += ['e_pos']
    param_args = [folded[n] for n in param_names]
    param_specs = [pl.BlockSpec(a.shape, lambda i: (0, 0)) for a in param_args]

    pos_flat, vel_flat = pl.pallas_call(
        _make_kernel(has_eps, has_start, compute_dtype),
        out_shape=(jax.ShapeDtypeStruct((B, TA), jnp.float32),
                   jax.ShapeDtypeStruct((B, TA), jnp.float32)),
        grid=(n_blocks,),
        in_specs=batch_specs + param_specs,
        out_specs=(pl.BlockSpec((TB, TA), lambda i: (i, 0)),
                   pl.BlockSpec((TB, TA), lambda i: (i, 0))),
        compiler_params=pltpu.CompilerParams(
            dimension_semantics=("parallel",),            # megacore sharding on v7x
            vmem_limit_bytes=32 * 1024 * 1024),
    )(*batch_args, *param_args)

    des_pos = pos_flat.reshape(B, N_STEPS, ACTION_DIM)     # free reshape, no transpose
    des_vel = vel_flat.reshape(B, N_STEPS, ACTION_DIM)

    # action std: softplus(log_std + shift) + 1e-8, diag-embedded (parameter only)
    std_vec = jax.nn.softplus(params['log_std'].reshape(-1) + _SHIFT) + 1e-8
    std = jnp.diag(std_vec.astype(des_pos.dtype))
    if expand_std:   # module semantics; torch .expand is a view, here it may materialize
        std = jnp.broadcast_to(std, (B, N_STEPS, ACTION_DIM, ACTION_DIM))
    return des_pos, des_vel, std


# ----------------------------------------------------------------------------
# Pure-JAX reference (for correctness checking)
# ----------------------------------------------------------------------------
def _reference_forward(x, params, eps, start_pos, train=True):
    hi = jax.lax.Precision.HIGHEST
    x6 = x[:, jnp.array(SEL_IDX)]
    h1 = jnp.tanh(jnp.dot(x6, params['w1'], precision=hi) + params['b1'])
    h2 = jnp.tanh(jnp.dot(h1, params['w2'], precision=hi) + params['b2'])
    weights = jnp.dot(h2, params['wmu'], precision=hi) + params['bmu']
    if train:
        w_std = jax.nn.softplus(params['pre_std'] + _SHIFT) + 1e-8
        weights = weights + w_std * eps
    des_pos = jnp.dot(weights, params['pos_proj'], precision=hi).reshape(-1, N_STEPS, ACTION_DIM)
    des_vel = jnp.dot(weights, params['vel_proj'], precision=hi).reshape(-1, N_STEPS, ACTION_DIM)
    if start_pos is not None:
        des_pos = des_pos + start_pos.reshape(-1, 1, ACTION_DIM)
    std_vec = jax.nn.softplus(params['log_std'].reshape(-1) + _SHIFT) + 1e-8
    std = jnp.broadcast_to(jnp.diag(std_vec),
                           des_pos.shape[:-1] + (ACTION_DIM, ACTION_DIM))
    return des_pos, des_vel, std


def _check_close(name, got, ref, tol=2e-2):
    got = jnp.asarray(got, jnp.float32)
    ref = jnp.asarray(ref, jnp.float32)
    scale = float(jnp.max(jnp.abs(ref)))
    err = float(jnp.max(jnp.abs(got - ref)))
    assert err <= tol * (1.0 + scale), f"{name}: max|err|={err:.3e} scale={scale:.3e}"


# TODO(synk): ProMPWrapper.act / MetaWorldController (PD controller) is not part of
# forward() and is not implemented here; the policy's internal rsample RNG is
# externalized as the explicit eps input.


if __name__ == "__main__":
    key = jax.random.PRNGKey(0)
    kp, kx, ke, ks = jax.random.split(key, 4)
    params = init_params(kp)

    B = 2
    x = jax.random.normal(kx, (B, OBS_DIM), dtype=jnp.float32)
    eps = jax.random.normal(ke, (B, WEIGHT_DIM), dtype=jnp.float32)
    start_pos = jax.random.normal(ks, (B, 1, ACTION_DIM), dtype=jnp.float32)

    # --- train path (rsample + zero_start), single full-size block -------------
    des_pos, des_vel, std = promp_wrapper_forward(x, params, eps=eps,
                                                  start_pos=start_pos, train=True)
    jax.block_until_ready((des_pos, des_vel, std))
    assert des_pos.shape == (B, N_STEPS, ACTION_DIM)
    assert des_vel.shape == (B, N_STEPS, ACTION_DIM)
    assert std.shape == (B, N_STEPS, ACTION_DIM, ACTION_DIM)
    assert bool(jnp.all(jnp.isfinite(des_pos)))
    assert bool(jnp.all(jnp.isfinite(des_vel)))
    assert bool(jnp.all(std >= 0.0))
    ref_pos, ref_vel, ref_std = _reference_forward(x, params, eps, start_pos, train=True)
    _check_close("train des_pos", des_pos, ref_pos)
    _check_close("train des_vel", des_vel, ref_vel)
    assert bool(jnp.allclose(std, ref_std))

    # --- eval path, no start_pos (specialized kernel: no eps / start streams) --
    ev_pos, ev_vel, ev_std = promp_wrapper_forward(x, params, train=False)
    jax.block_until_ready((ev_pos, ev_vel, ev_std))
    rv_pos, rv_vel, _ = _reference_forward(x, params, None, None, train=False)
    _check_close("eval des_pos", ev_pos, rv_pos)
    _check_close("eval des_vel", ev_vel, rv_vel)

    # --- multi-block grid with a partial edge block (B=300, TB=128) ------------
    kx2, ke2, ks2 = jax.random.split(jax.random.PRNGKey(1), 3)
    B2 = 300
    x2 = jax.random.normal(kx2, (B2, OBS_DIM), dtype=jnp.float32)
    eps2 = jax.random.normal(ke2, (B2, WEIGHT_DIM), dtype=jnp.float32)
    sp2 = jax.random.normal(ks2, (B2, 1, ACTION_DIM), dtype=jnp.float32)
    p2, v2, _ = promp_wrapper_forward(x2, params, eps=eps2, start_pos=sp2,
                                      train=True, block_b=128, expand_std=False)
    jax.block_until_ready((p2, v2))
    r2p, r2v, _ = _reference_forward(x2, params, eps2, sp2, train=True)
    _check_close("grid des_pos", p2, r2p)
    _check_close("grid des_vel", v2, r2v)

    # --- bf16 MXU-operand variant (f32 accumulation) ----------------------------
    b_pos, b_vel, _ = promp_wrapper_forward(x, params, eps=eps, start_pos=start_pos,
                                            train=True, compute_dtype=jnp.bfloat16,
                                            expand_std=False)
    jax.block_until_ready((b_pos, b_vel))
    _check_close("bf16 des_pos", b_pos, ref_pos, tol=3e-2)
    _check_close("bf16 des_vel", b_vel, ref_vel, tol=3e-2)

    print("KERNEL_OK")
</pallas_src>

<mosaic_0001>
module attributes {stable_mosaic.version = 11 : i64} {
  func.func @kernel(%arg0: i32, %arg1: memref<2x39xf32, #tpu.memory_space<vmem>>, %arg2: memref<2x20xf32, #tpu.memory_space<vmem>>, %arg3: memref<2x4xf32, #tpu.memory_space<vmem>>, %arg4: memref<39x32xf32, #tpu.memory_space<vmem>>, %arg5: memref<1x32xf32, #tpu.memory_space<vmem>>, %arg6: memref<32x32xf32, #tpu.memory_space<vmem>>, %arg7: memref<1x32xf32, #tpu.memory_space<vmem>>, %arg8: memref<32x32xf32, #tpu.memory_space<vmem>>, %arg9: memref<32x32xf32, #tpu.memory_space<vmem>>, %arg10: memref<1x32xf32, #tpu.memory_space<vmem>>, %arg11: memref<1x32xf32, #tpu.memory_space<vmem>>, %arg12: memref<20x32xf32, #tpu.memory_space<vmem>>, %arg13: memref<20x32xf32, #tpu.memory_space<vmem>>, %arg14: memref<4x32xf32, #tpu.memory_space<vmem>>, %arg15: memref<2x32xf32, #tpu.memory_space<vmem>>, %arg16: memref<2x32xf32, #tpu.memory_space<vmem>>) attributes {dimension_semantics = [#tpu.dimension_semantics<parallel>], iteration_bounds = array<i64: 1>, scalar_prefetch = 0 : i64, scratch_operands = 0 : i64, tpu.core_type = #tpu.core_type<tc>, window_params = [{transform_indices = @transform_0, window_bounds = array<i64: 2, 39>}, {transform_indices = @transform_1, window_bounds = array<i64: 2, 20>}, {transform_indices = @transform_2, window_bounds = array<i64: 2, 4>}, {pipeline_mode = #tpu.pipeline_mode<synchronous>, transform_indices = @transform_3, window_bounds = array<i64: 39, 32>}, {pipeline_mode = #tpu.pipeline_mode<synchronous>, transform_indices = @transform_4, window_bounds = array<i64: 1, 32>}, {pipeline_mode = #tpu.pipeline_mode<synchronous>, transform_indices = @transform_5, window_bounds = array<i64: 32, 32>}, {pipeline_mode = #tpu.pipeline_mode<synchronous>, transform_indices = @transform_6, window_bounds = array<i64: 1, 32>}, {pipeline_mode = #tpu.pipeline_mode<synchronous>, transform_indices = @transform_7, window_bounds = array<i64: 32, 32>}, {pipeline_mode = #tpu.pipeline_mode<synchronous>, transform_indices = @transform_8, window_bounds = array<i64: 32, 32>}, {pipeline_mode = #tpu.pipeline_mode<synchronous>, transform_indices = @transform_9, window_bounds = array<i64: 1, 32>}, {pipeline_mode = #tpu.pipeline_mode<synchronous>, transform_indices = @transform_10, window_bounds = array<i64: 1, 32>}, {pipeline_mode = #tpu.pipeline_mode<synchronous>, transform_indices = @transform_11, window_bounds = array<i64: 20, 32>}, {pipeline_mode = #tpu.pipeline_mode<synchronous>, transform_indices = @transform_12, window_bounds = array<i64: 20, 32>}, {pipeline_mode = #tpu.pipeline_mode<synchronous>, transform_indices = @transform_13, window_bounds = array<i64: 4, 32>}, {transform_indices = @transform_14, window_bounds = array<i64: 2, 32>}, {transform_indices = @transform_15, window_bounds = array<i64: 2, 32>}]} {
    %c0 = arith.constant 0 : index
    %c0_0 = arith.constant 0 : index
    %0 = vector.load %arg1[%c0, %c0_0] : memref<2x39xf32, #tpu.memory_space<vmem>>, vector<2x39xf32>
    %c0_1 = arith.constant 0 : index
    %c0_2 = arith.constant 0 : index
    %1 = vector.load %arg4[%c0_1, %c0_2] : memref<39x32xf32, #tpu.memory_space<vmem>>, vector<39x32xf32>
    %cst = arith.constant dense<0.000000e+00> : vector<2x32xf32>
    %2 = tpu.matmul %0, %1, %cst {dimension_numbers = #tpu.dot_dimension_numbers<[1], [0], [0], [1], [0, 0, 1, 1], [], []>} : vector<2x39xf32>, vector<39x32xf32>, vector<2x32xf32> -> vector<2x32xf32>
    %c0_3 = arith.constant 0 : index
    %c0_4 = arith.constant 0 : index
    %3 = vector.load %arg5[%c0_3, %c0_4] : memref<1x32xf32, #tpu.memory_space<vmem>>, vector<1x32xf32>
    %4 = vector.broadcast %3 : vector<1x32xf32> to vector<2x32xf32>
    %5 = arith.addf %2, %4 : vector<2x32xf32>
    %6 = math.tanh %5 : vector<2x32xf32>
    %c0_5 = arith.constant 0 : index
    %c0_6 = arith.constant 0 : index
    %7 = vector.load %arg6[%c0_5, %c0_6] : memref<32x32xf32, #tpu.memory_space<vmem>>, vector<32x32xf32>
    %cst_7 = arith.constant dense<0.000000e+00> : vector<2x32xf32>
    %8 = tpu.matmul %6, %7, %cst_7 {dimension_numbers = #tpu.dot_dimension_numbers<[1], [0], [0], [1], [0, 0, 1, 1], [], []>} : vector<2x32xf32>, vector<32x32xf32>, vector<2x32xf32> -> vector<2x32xf32>
    %c0_8 = arith.constant 0 : index
    %c0_9 = arith.constant 0 : index
    %9 = vector.load %arg7[%c0_8, %c0_9] : memref<1x32xf32, #tpu.memory_space<vmem>>, vector<1x32xf32>
    %10 = vector.broadcast %9 : vector<1x32xf32> to vector<2x32xf32>
    %11 = arith.addf %8, %10 : vector<2x32xf32>
    %12 = math.tanh %11 : vector<2x32xf32>
    %c0_10 = arith.constant 0 : index
    %c0_11 = arith.constant 0 : index
    %13 = vector.load %arg8[%c0_10, %c0_11] : memref<32x32xf32, #tpu.memory_space<vmem>>, vector<32x32xf32>
    %cst_12 = arith.constant dense<0.000000e+00> : vector<2x32xf32>
    %14 = tpu.matmul %12, %13, %cst_12 {dimension_numbers = #tpu.dot_dimension_numbers<[1], [0], [0], [1], [0, 0, 1, 1], [], []>} : vector<2x32xf32>, vector<32x32xf32>, vector<2x32xf32> -> vector<2x32xf32>
    %c0_13 = arith.constant 0 : index
    %c0_14 = arith.constant 0 : index
    %15 = vector.load %arg10[%c0_13, %c0_14] : memref<1x32xf32, #tpu.memory_space<vmem>>, vector<1x32xf32>
    %16 = vector.broadcast %15 : vector<1x32xf32> to vector<2x32xf32>
    %17 = arith.addf %14, %16 : vector<2x32xf32>
    %c0_15 = arith.constant 0 : index
    %c0_16 = arith.constant 0 : index
    %18 = vector.load %arg9[%c0_15, %c0_16] : memref<32x32xf32, #tpu.memory_space<vmem>>, vector<32x32xf32>
    %cst_17 = arith.constant dense<0.000000e+00> : vector<2x32xf32>
    %19 = tpu.matmul %12, %18, %cst_17 {dimension_numbers = #tpu.dot_dimension_numbers<[1], [0], [0], [1], [0, 0, 1, 1], [], []>} : vector<2x32xf32>, vector<32x32xf32>, vector<2x32xf32> -> vector<2x32xf32>
    %c0_18 = arith.constant 0 : index
    %c0_19 = arith.constant 0 : index
    %20 = vector.load %arg11[%c0_18, %c0_19] : memref<1x32xf32, #tpu.memory_space<vmem>>, vector<1x32xf32>
    %21 = vector.broadcast %20 : vector<1x32xf32> to vector<2x32xf32>
    %22 = arith.addf %19, %21 : vector<2x32xf32>
    %c0_20 = arith.constant 0 : index
    %c0_21 = arith.constant 0 : index
    %23 = vector.load %arg2[%c0_20, %c0_21] : memref<2x20xf32, #tpu.memory_space<vmem>>, vector<2x20xf32>
    %c0_22 = arith.constant 0 : index
    %c0_23 = arith.constant 0 : index
    %24 = vector.load %arg12[%c0_22, %c0_23] : memref<20x32xf32, #tpu.memory_space<vmem>>, vector<20x32xf32>
    %cst_24 = arith.constant dense<0.000000e+00> : vector<2x32xf32>
    %25 = tpu.matmul %23, %24, %cst_24 {dimension_numbers = #tpu.dot_dimension_numbers<[1], [0], [0], [1], [0, 0, 1, 1], [], []>} : vector<2x20xf32>, vector<20x32xf32>, vector<2x32xf32> -> vector<2x32xf32>
    %26 = arith.addf %17, %25 : vector<2x32xf32>
    %c0_25 = arith.constant 0 : index
    %c0_26 = arith.constant 0 : index
    %27 = vector.load %arg13[%c0_25, %c0_26] : memref<20x32xf32, #tpu.memory_space<vmem>>, vector<20x32xf32>
    %cst_27 = arith.constant dense<0.000000e+00> : vector<2x32xf32>
    %28 = tpu.matmul %23, %27, %cst_27 {dimension_numbers = #tpu.dot_dimension_numbers<[1], [0], [0], [1], [0, 0, 1, 1], [], []>} : vector<2x20xf32>, vector<20x32xf32>, vector<2x32xf32> -> vector<2x32xf32>
    %29 = arith.addf %22, %28 : vector<2x32xf32>
    %c0_28 = arith.constant 0 : index
    %c0_29 = arith.constant 0 : index
    %30 = vector.load %arg3[%c0_28, %c0_29] : memref<2x4xf32, #tpu.memory_space<vmem>>, vector<2x4xf32>
    %c0_30 = arith.constant 0 : index
    %c0_31 = arith.constant 0 : index
    %31 = vector.load %arg14[%c0_30, %c0_31] : memref<4x32xf32, #tpu.memory_space<vmem>>, vector<4x32xf32>
    %cst_32 = arith.constant dense<0.000000e+00> : vector<2x32xf32>
    %32 = tpu.matmul %30, %31, %cst_32 {dimension_numbers = #tpu.dot_dimension_numbers<[1], [0], [0], [1], [0, 0, 1, 1], [], []>} : vector<2x4xf32>, vector<4x32xf32>, vector<2x32xf32> -> vector<2x32xf32>
    %33 = arith.addf %26, %32 : vector<2x32xf32>
    %c0_33 = arith.constant 0 : index
    %c0_34 = arith.constant 0 : index
    %34 = vector.load %arg15[%c0_33, %c0_34] : memref<2x32xf32, #tpu.memory_space<vmem>>, vector<2x32xf32>
    tpu.vector_store %arg15[%c0_33, %c0_34], %33 {strides = array<i32>} : memref<2x32xf32, #tpu.memory_space<vmem>>, vector<2x32xf32>,
    %c0_35 = arith.constant 0 : index
    %c0_36 = arith.constant 0 : index
    %35 = vector.load %arg16[%c0_35, %c0_36] : memref<2x32xf32, #tpu.memory_space<vmem>>, vector<2x32xf32>
    tpu.vector_store %arg16[%c0_35, %c0_36], %29 {strides = array<i32>} : memref<2x32xf32, #tpu.memory_space<vmem>>, vector<2x32xf32>,
    return
  }
  func.func @transform_0(%arg0: i32) -> (i32, i32) {
    %c0_i32 = arith.constant 0 : i32
    %c0_i32_0 = arith.constant 0 : i32
    return %arg0, %c0_i32 : i32, i32
  }
  func.func @transform_1(%arg0: i32) -> (i32, i32) {
    %c0_i32 = arith.constant 0 : i32
    %c0_i32_0 = arith.constant 0 : i32
    return %arg0, %c0_i32 : i32, i32
  }
  func.func @transform_2(%arg0: i32) -> (i32, i32) {
    %c0_i32 = arith.constant 0 : i32
    %c0_i32_0 = arith.constant 0 : i32
    return %arg0, %c0_i32 : i32, i32
  }
  func.func @transform_3(%arg0: i32) -> (i32, i32) {
    %c0_i32 = arith.constant 0 : i32
    %c0_i32_0 = arith.constant 0 : i32
    %c0_i32_1 = arith.constant 0 : i32
    return %c0_i32, %c0_i32_0 : i32, i32
  }
  func.func @transform_4(%arg0: i32) -> (i32, i32) {
    %c0_i32 = arith.constant 0 : i32
    %c0_i32_0 = arith.constant 0 : i32
    %c0_i32_1 = arith.constant 0 : i32
    return %c0_i32, %c0_i32_0 : i32, i32
  }
  func.func @transform_5(%arg0: i32) -> (i32, i32) {
    %c0_i32 = arith.constant 0 : i32
    %c0_i32_0 = arith.constant 0 : i32
    %c0_i32_1 = arith.constant 0 : i32
    return %c0_i32, %c0_i32_0 : i32, i32
  }
  func.func @transform_6(%arg0: i32) -> (i32, i32) {
    %c0_i32 = arith.constant 0 : i32
    %c0_i32_0 = arith.constant 0 : i32
    %c0_i32_1 = arith.constant 0 : i32
    return %c0_i32, %c0_i32_0 : i32, i32
  }
  func.func @transform_7(%arg0: i32) -> (i32, i32) {
    %c0_i32 = arith.constant 0 : i32
    %c0_i32_0 = arith.constant 0 : i32
    %c0_i32_1 = arith.constant 0 : i32
    return %c0_i32, %c0_i32_0 : i32, i32
  }
  func.func @transform_8(%arg0: i32) -> (i32, i32) {
    %c0_i32 = arith.constant 0 : i32
    %c0_i32_0 = arith.constant 0 : i32
    %c0_i32_1 = arith.constant 0 : i32
    return %c0_i32, %c0_i32_0 : i32, i32
  }
  func.func @transform_9(%arg0: i32) -> (i32, i32) {
    %c0_i32 = arith.constant 0 : i32
    %c0_i32_0 = arith.constant 0 : i32
    %c0_i32_1 = arith.constant 0 : i32
    return %c0_i32, %c0_i32_0 : i32, i32
  }
  func.func @transform_10(%arg0: i32) -> (i32, i32) {
    %c0_i32 = arith.constant 0 : i32
    %c0_i32_0 = arith.constant 0 : i32
    %c0_i32_1 = arith.constant 0 : i32
    return %c0_i32, %c0_i32_0 : i32, i32
  }
  func.func @transform_11(%arg0: i32) -> (i32, i32) {
    %c0_i32 = arith.constant 0 : i32
    %c0_i32_0 = arith.constant 0 : i32
    %c0_i32_1 = arith.constant 0 : i32
    return %c0_i32, %c0_i32_0 : i32, i32
  }
  func.func @transform_12(%arg0: i32) -> (i32, i32) {
    %c0_i32 = arith.constant 0 : i32
    %c0_i32_0 = arith.constant 0 : i32
    %c0_i32_1 = arith.constant 0 : i32
    return %c0_i32, %c0_i32_0 : i32, i32
  }
  func.func @transform_13(%arg0: i32) -> (i32, i32) {
    %c0_i32 = arith.constant 0 : i32
    %c0_i32_0 = arith.constant 0 : i32
    %c0_i32_1 = arith.constant 0 : i32
    return %c0_i32, %c0_i32_0 : i32, i32
  }
  func.func @transform_14(%arg0: i32) -> (i32, i32) {
    %c0_i32 = arith.constant 0 : i32
    %c0_i32_0 = arith.constant 0 : i32
    return %arg0, %c0_i32 : i32, i32
  }
  func.func @transform_15(%arg0: i32) -> (i32, i32) {
    %c0_i32 = arith.constant 0 : i32
    %c0_i32_0 = arith.constant 0 : i32
    return %arg0, %c0_i32 : i32, i32
  }
}

</mosaic_0001>

<llo_original>
// kernel: tpu_custom_call.1
$region0: #{tpu_custom_call.1}
  #allocation0 [shape = 'u32[]', space=smem, size = 0x4, offset = 0x4, fixed_abs, tag = 'smem constant byte address 0x4 - core index']
  #allocation1 [shape = 'u32[144,128]{1,0:T(1,128)}', space=vmem, size = 0x12000, scoped, tag = 'internal scratch']
  %s0 = inlined_call_operand.vmem [shape: f32[2,39], index: 0, kind: input, shape index: {}]
  %s1 = inlined_call_operand.hbm [shape: f32[2,20], index: 1, kind: input, shape index: {}]
  %s2 = inlined_call_operand.hbm [shape: f32[2,4], index: 2, kind: input, shape index: {}]
  %s3 = inlined_call_operand.vmem [shape: f32[39,32], index: 3, kind: input, shape index: {}]
  %s4 = inlined_call_operand.hbm [shape: f32[1,32], index: 4, kind: input, shape index: {}]
  %s5 = inlined_call_operand.vmem [shape: f32[32,32], index: 5, kind: input, shape index: {}]
  %s6 = inlined_call_operand.hbm [shape: f32[1,32], index: 6, kind: input, shape index: {}]
  %s7 = inlined_call_operand.vmem [shape: f32[32,32], index: 7, kind: input, shape index: {}]
  %s8 = inlined_call_operand.vmem [shape: f32[32,32], index: 8, kind: input, shape index: {}]
  %s9 = inlined_call_operand.vmem [shape: f32[1,32], index: 9, kind: input, shape index: {}]
  %s10 = inlined_call_operand.vmem [shape: f32[1,32], index: 10, kind: input, shape index: {}]
  %s11 = inlined_call_operand.hbm [shape: f32[20,32], index: 11, kind: input, shape index: {}]
  %s12 = inlined_call_operand.hbm [shape: f32[20,32], index: 12, kind: input, shape index: {}]
  %s13 = inlined_call_operand.vmem [shape: f32[4,32], index: 13, kind: input, shape index: {}]
  %s14 = inlined_call_operand.hbm [shape: f32[2,32], index: 14, kind: output, shape index: {0}]
  %s15 = inlined_call_operand.hbm [shape: f32[2,32], index: 15, kind: output, shape index: {1}]
  %16 = xla_tuple %s14, %s15
  %s17 = sld [smem:[#allocation0]]
  $region98: #{tpu_custom_call.1} parent=0
    _
  %s19 = ssub.s32 1, %s17
  %s20 = scalar_select 0, %s19, %s17
  $region1: #{tpu_custom_call.1} parent=0
    #allocation2 [shape = 'u8[1024]{0}', space=vmem, size = 0x400, scoped, tag = 'input window, operand 1, single buffered']
    #allocation3 [shape = 's32[1]{0}', space=sflag, size = 0x4, scoped, tag = 'scoped memory for tpu_custom_call.1']
    #allocation4 [shape = 's32[1]{0}', space=sflag, size = 0x4, scoped, tag = 'scoped memory for tpu_custom_call.1']
    #allocation5 [shape = 'u8[1024]{0}', space=vmem, size = 0x400, scoped, tag = 'input window, operand 2, single buffered']
    #allocation6 [shape = 's32[1]{0}', space=sflag, size = 0x4, scoped, tag = 'scoped memory for tpu_custom_call.1']
    #allocation7 [shape = 'u8[512]{0}', space=vmem, size = 0x400, scoped, tag = 'input window, operand 4, single buffered']
    #allocation8 [shape = 'u8[512]{0}', space=vmem, size = 0x400, scoped, tag = 'input window, operand 6, single buffered']
    #allocation9 [shape = 's32[1]{0}', space=sflag, size = 0x4, scoped, tag = 'scoped memory for tpu_custom_call.1']
    #allocation10 [shape = 'u8[12288]{0}', space=vmem, size = 0x3000, scoped, tag = 'input window, operand 11, single buffered']
    #allocation11 [shape = 'u8[12288]{0}', space=vmem, size = 0x3000, scoped, tag = 'input window, operand 12, single buffered']
    #allocation12 [shape = 's32[1]{0}', space=sflag, size = 0x4, scoped, tag = 'scoped memory for tpu_custom_call.1']
    #allocation13 [shape = 'u8[1024]{0}', space=vmem, size = 0x400, scoped, tag = 'output window, operand 0, single buffered']
    #allocation14 [shape = 'u8[1024]{0}', space=vmem, size = 0x400, scoped, tag = 'output window, operand 1, single buffered']
    #allocation15 [shape = 's32[1]{0}', space=sflag, size = 0x4, scoped, tag = 'scoped memory for tpu_custom_call.1']
    %21 = vsyncpa [#allocation3], 0
    %22 = vsyncpa [#allocation6], 0
    %23 = vsyncpa [#allocation9], 0
    %24 = vsyncpa [#allocation12], 0
    %25 = vsyncpa [#allocation4], 0
    %26 = vsyncpa [#allocation15], 0
    // Predicated region
    $region2: #{tpu_custom_call.1} parent=1 // pred_check
      _
    $region3: #{tpu_custom_call.1} parent=1 // pred_check_branch
      %28 = sbr.rel (0) target = $region5
    $region4: #{tpu_custom_call.1} parent=1 // pred_region
      _
    $region5: #{tpu_custom_call.1} parent=1 // pred_fallthru
      _
    // Predicated region
    $region6: #{tpu_custom_call.1} parent=1 // pred_check
      _
    $region7: #{tpu_custom_call.1} parent=1 // pred_check_branch
      %30 = sbr.rel (0) target = $region9
    $region8: #{tpu_custom_call.1} parent=1 // pred_region
      %s32 = ssub.s32 32, 32
      %33 = vsyncadd [#allocation3], %s32
      %s35 = sshll.u32 [#allocation2], 4
      %s36 = int_to_ptr.vmem [resolvable:$true] %s35
      %38 = dma.hbm_to_vmem [thread:$0]  %s1, 32, %s36, [#allocation3]
    $region9: #{tpu_custom_call.1} parent=1 // pred_fallthru
      _
    // Predicated region
    $region10: #{tpu_custom_call.1} parent=1 // pred_check
      _
    $region11: #{tpu_custom_call.1} parent=1 // pred_check_branch
      %40 = sbr.rel (0) target = $region13
    $region12: #{tpu_custom_call.1} parent=1 // pred_region
      %s42 = ssub.s32 32, 32
      %43 = vsyncadd [#allocation6], %s42
      %s45 = sshll.u32 [#allocation5], 4
      %s46 = int_to_ptr.vmem [resolvable:$true] %s45
      %48 = dma.hbm_to_vmem [thread:$0]  %s2, 32, %s46, [#allocation6]
    $region13: #{tpu_custom_call.1} parent=1 // pred_fallthru
      _
    // Predicated region
    $region14: #{tpu_custom_call.1} parent=1 // pred_check
      _
    $region15: #{tpu_custom_call.1} parent=1 // pred_check_branch
      %50 = sbr.rel (0) target = $region17
    $region16: #{tpu_custom_call.1} parent=1 // pred_region
      _
    $region17: #{tpu_custom_call.1} parent=1 // pred_fallthru
      _
    // Predicated region
    $region18: #{tpu_custom_call.1} parent=1 // pred_check
      _
    $region19: #{tpu_custom_call.1} parent=1 // pred_check_branch
      %52 = sbr.rel (0) target = $region21
    $region20: #{tpu_custom_call.1} parent=1 // pred_region
      %s54 = ssub.s32 16, 16
      %55 = vsyncadd [#allocation6], %s54
      %s57 = sshll.u32 [#allocation7], 4
      %s58 = int_to_ptr.vmem [resolvable:$true] %s57
      %60 = dma.hbm_to_vmem [thread:$0]  %s4, 16, %s58, [#allocation6]
    $region21: #{tpu_custom_call.1} parent=1 // pred_fallthru
      _
    // Predicated region
    $region22: #{tpu_custom_call.1} parent=1 // pred_check
      _
    $region23: #{tpu_custom_call.1} parent=1 // pred_check_branch
      %62 = sbr.rel (0) target = $region25
    $region24: #{tpu_custom_call.1} parent=1 // pred_region
      _
    $region25: #{tpu_custom_call.1} parent=1 // pred_fallthru
      _
    // Predicated region
    $region26: #{tpu_custom_call.1} parent=1 // pred_check
      _
    $region27: #{tpu_custom_call.1} parent=1 // pred_check_branch
      %64 = sbr.rel (0) target = $region29
    $region28: #{tpu_custom_call.1} parent=1 // pred_region
      %s66 = ssub.s32 16, 16
      %67 = vsyncadd [#allocation9], %s66
      %s69 = sshll.u32 [#allocation8], 4
      %s70 = int_to_ptr.vmem [resolvable:$true] %s69
      %72 = dma.hbm_to_vmem [thread:$0]  %s6, 16, %s70, [#allocation9]
    $region29: #{tpu_custom_call.1} parent=1 // pred_fallthru
      _
    // Predicated region
    $region30: #{tpu_custom_call.1} parent=1 // pred_check
      _
    $region31: #{tpu_custom_call.1} parent=1 // pred_check_branch
      %74 = sbr.rel (0) target = $region33
    $region32: #{tpu_custom_call.1} parent=1 // pred_region
      _
    $region33: #{tpu_custom_call.1} parent=1 // pred_fallthru
      _
    // Predicated region
    $region34: #{tpu_custom_call.1} parent=1 // pred_check
      _
    $region35: #{tpu_custom_call.1} parent=1 // pred_check_branch
      %76 = sbr.rel (0) target = $region37
    $region36: #{tpu_custom_call.1} parent=1 // pred_region
      _
    $region37: #{tpu_custom_call.1} parent=1 // pred_fallthru
      _
    // Predicated region
    $region38: #{tpu_custom_call.1} parent=1 // pred_check
      _
    $region39: #{tpu_custom_call.1} parent=1 // pred_check_branch
      %78 = sbr.rel (0) target = $region41
    $region40: #{tpu_custom_call.1} parent=1 // pred_region
      _
    $region41: #{tpu_custom_call.1} parent=1 // pred_fallthru
      _
    // Predicated region
    $region42: #{tpu_custom_call.1} parent=1 // pred_check
      _
    $region43: #{tpu_custom_call.1} parent=1 // pred_check_branch
      %80 = sbr.rel (0) target = $region45
    $region44: #{tpu_custom_call.1} parent=1 // pred_region
      _
    $region45: #{tpu_custom_call.1} parent=1 // pred_fallthru
      _
    // Predicated region
    $region46: #{tpu_custom_call.1} parent=1 // pred_check
      _
    $region47: #{tpu_custom_call.1} parent=1 // pred_check_branch
      %82 = sbr.rel (0) target = $region49
    $region48: #{tpu_custom_call.1} parent=1 // pred_region
      %s84 = ssub.s32 384, 384
      %85 = vsyncadd [#allocation9], %s84
      %s86 = sshll.u32 [#allocation10], 4
      %s87 = int_to_ptr.vmem [resolvable:$true] %s86
      %92 = dma.hbm_to_vmem [thread:$0]  %s11, 384, %s87, [#allocation9], 128, 128, 8
    $region49: #{tpu_custom_call.1} parent=1 // pred_fallthru
      _
    // Predicated region
    $region50: #{tpu_custom_call.1} parent=1 // pred_check
      _
    $region51: #{tpu_custom_call.1} parent=1 // pred_check_branch
      %94 = sbr.rel (0) target = $region53
    $region52: #{tpu_custom_call.1} parent=1 // pred_region
      %s96 = ssub.s32 384, 384
      %97 = vsyncadd [#allocation12], %s96
      %s98 = sshll.u32 [#allocation11], 4
      %s99 = int_to_ptr.vmem [resolvable:$true] %s98
      %104 = dma.hbm_to_vmem [thread:$0]  %s12, 384, %s99, [#allocation12], 128, 128, 8
    $region53: #{tpu_custom_call.1} parent=1 // pred_fallthru
      _
    // Predicated region
    $region54: #{tpu_custom_call.1} parent=1 // pred_check
      _
    $region55: #{tpu_custom_call.1} parent=1 // pred_check_branch
      %106 = sbr.rel (0) target = $region57
    $region56: #{tpu_custom_call.1} parent=1 // pred_region
      _
    $region57: #{tpu_custom_call.1} parent=1 // pred_fallthru
      _
    // Predicated region
    $region58: #{tpu_custom_call.1} parent=1 // pred_check
      _
    $region59: #{tpu_custom_call.1} parent=1 // pred_check_branch
      %108 = sbr.rel (0) target = $region61
    $region60: #{tpu_custom_call.1} parent=1 // pred_region
      %109 = dma.done [#allocation3], 32
    $region61: #{tpu_custom_call.1} parent=1 // pred_fallthru
      _
    // Predicated region
    $region62: #{tpu_custom_call.1} parent=1 // pred_check
      _
    $region63: #{tpu_custom_call.1} parent=1 // pred_check_branch
      %111 = sbr.rel (0) target = $region65
    $region64: #{tpu_custom_call.1} parent=1 // pred_region
      %112 = dma.done [#allocation6], 32
    $region65: #{tpu_custom_call.1} parent=1 // pred_fallthru
      _
    // Predicated region
    $region66: #{tpu_custom_call.1} parent=1 // pred_check
      _
    $region67: #{tpu_custom_call.1} parent=1 // pred_check_branch
      %114 = sbr.rel (0) target = $region69
    $region68: #{tpu_custom_call.1} parent=1 // pred_region
      %115 = dma.done [#allocation6], 16
    $region69: #{tpu_custom_call.1} parent=1 // pred_fallthru
      _
    // Predicated region
    $region70: #{tpu_custom_call.1} parent=1 // pred_check
      _
    $region71: #{tpu_custom_call.1} parent=1 // pred_check_branch
      %117 = sbr.rel (0) target = $region73
    $region72: #{tpu_custom_call.1} parent=1 // pred_region
      %118 = dma.done [#allocation9], 16
    $region73: #{tpu_custom_call.1} parent=1 // pred_fallthru
      _
    // Predicated region
    $region74: #{tpu_custom_call.1} parent=1 // pred_check
      _
    $region75: #{tpu_custom_call.1} parent=1 // pred_check_branch
      %120 = sbr.rel (0) target = $region77
    $region76: #{tpu_custom_call.1} parent=1 // pred_region
      %121 = dma.done [#allocation9], 384
    $region77: #{tpu_custom_call.1} parent=1 // pred_fallthru
      _
    // Predicated region
    $region78: #{tpu_custom_call.1} parent=1 // pred_check
      _
    $region79: #{tpu_custom_call.1} parent=1 // pred_check_branch
      %123 = sbr.rel (0) target = $region81
    $region80: #{tpu_custom_call.1} parent=1 // pred_region
      %124 = dma.done [#allocation12], 384
    $region81: #{tpu_custom_call.1} parent=1 // pred_fallthru
      _
    %v125 = vld [vmem:[%s0] sm:$0x3]
    %v126 = vld [vmem:[%s3] sm:$0xff]
    %v127 = vld [vmem:[%s3 + $0x8] sm:$0xff]
    %v128 = vld [vmem:[%s3 + $0x10] sm:$0xff]
    %v129 = vld [vmem:[%s3 + $0x18] sm:$0xff]
    %v130 = vld [vmem:[%s3 + $0x20] sm:$0x7f]
    %v131 = vld [vmem:[#allocation7] sm:$0x1]
    %v133 = vlaneseq
    %v134 = vshrl.u32 %v133, 7
    %v135 = vsub.s32 0, %v134
    %v136 = vrot.slane %v131, %v135
    %vm138 = vcmask 318464
    %v140 = vsel %vm138, %v125, 0
    %vm142 = vcmask 1046528
    %v144 = vsel %vm142, %v130, 0
    %146 = vmatprep.subr.mxu0 0.0
    %147 = vmatpush1.msra.mxu0 %v126
    %148 = vmatprep.subr.mxu0 0.0
    %149 = vmatpush1.msra.mxu0 %v127
    %150 = vmatprep.subr.mxu0 0.0
    %151 = vmatpush1.msra.mxu0 %v128
    %152 = vmatprep.subr.mxu0 0.0
    %153 = vmatpush1.msra.mxu0 %v129
    %154 = vmatprep.subr.mxu0 0.0
    %155 = vmatpush1.msra.mxu0 %v144
    %156 = vmatprep.subr.mxu0 0.0
    %157 = vmatpush1.msra.mxu0 0.0
    %158 = vmatprep.subr.mxu0 0.0
    %159 = vmatpush1.msra.mxu0 0.0
    %160 = vmatprep.subr.mxu0 0.0
    %161 = vmatpush1.msra.mxu0 0.0
    %162 = vmatprep.subr.mxu0 0.0
    %163 = vmatpush1.msra.mxu0 0.0
    %164 = vmatprep.subr.mxu0 0.0
    %165 = vmatpush1.msra.mxu0 0.0
    %166 = vmatprep.subr.mxu0 0.0
    %167 = vmatpush1.msra.mxu0 0.0
    %168 = vmatprep.subr.mxu0 0.0
    %169 = vmatpush1.msra.mxu0 0.0
    %170 = vmatprep.subr.mxu0 0.0
    %171 = vmatpush1.msra.mxu0 0.0
    %172 = vmatprep.subr.mxu0 0.0
    %173 = vmatpush1.msra.mxu0 0.0
    %174 = vmatprep.subr.mxu0 0.0
    %175 = vmatpush1.msra.mxu0 0.0
    %176 = vmatprep.subr.mxu0 0.0
    %177 = vmatpush1.msra.mxu0 0.0
    %178 = vmatprep.subr.mxu0 0.0
    %179 = vmatpush1.msra.mxu0 0.0
    %180 = vmatprep.subr.mxu0 0.0
    %181 = vmatpush1.msra.mxu0 0.0
    %182 = vmatprep.subr.mxu0 0.0
    %183 = vmatpush1.msra.mxu0 0.0
    %184 = vmatprep.subr.mxu0 0.0
    %185 = vmatpush1.msra.mxu0 0.0
    %186 = vmatprep.subr.mxu0 0.0
    %187 = vmatpush1.msra.mxu0 0.0
    %188 = vmatprep.subr.mxu0 0.0
    %189 = vmatpush1.msra.mxu0 0.0
    %190 = vmatprep.subr.mxu0 0.0
    %191 = vmatpush1.msra.mxu0 0.0
    %192 = vmatprep.subr.mxu0 0.0
    %193 = vmatpush1.msra.mxu0 0.0
    %194 = vmatprep.subr.mxu0 0.0
    %195 = vmatpush1.msra.mxu0 0.0
    %196 = vmatprep.subr.mxu0 0.0
    %197 = vmatpush1.msra.mxu0 0.0
    %198 = vmatprep.subr.mxu0 0.0
    %199 = vmatpush1.msra.mxu0 0.0
    %200 = vmatprep.subr.mxu0 0.0
    %201 = vmatpush1.msra.mxu0 0.0
    %202 = vmatprep.subr.mxu0 0.0
    %203 = vmatpush1.msra.mxu0 0.0
    %204 = vmatprep.subr.mxu0 0.0
    %205 = vmatpush1.msra.mxu0 0.0
    %206 = vmatprep.subr.mxu0 0.0
    %207 = vmatpush1.msra.mxu0 0.0
    %208 = vmatprep.subr.mxu0 0.0
    %209 = vmatpush1.msra.mxu0 0.0
    %210 = vmatprep.mubr.f32.mxu0 0.0
    %211 = vmatmul.mubr.f32.gmra.mrb[0].mxu0 %v140
    %v212 = vpop.f32.mrb[0].mxu0
    %v213 = vadd.f32 %v136, %v212
    %v214 = vpop.f32.mrb[0].mxu0
    %215 = vdwg.mxu0
    %v216 = vtanh.pop %v213
    %v217 = vld [vmem:[%s5] sm:$0xff]
    %v218 = vld [vmem:[%s5 + $0x8] sm:$0xff]
    %v219 = vld [vmem:[%s5 + $0x10] sm:$0xff]
    %v220 = vld [vmem:[%s5 + $0x18] sm:$0xff]
    %v221 = vld [vmem:[#allocation8] sm:$0x1]
    %v223 = vlaneseq
    %v224 = vshrl.u32 %v223, 7
    %v225 = vsub.s32 0, %v224
    %v226 = vrot.slane %v221, %v225
    %vm228 = vcmask 261120
    %v230 = vsel %vm228, %v216, 0
    %232 = vmatprep.subr.mxu0 0.0
    %233 = vmatpush1.msra.mxu0 %v217
    %234 = vmatprep.subr.mxu0 0.0
    %235 = vmatpush1.msra.mxu0 %v218
    %236 = vmatprep.subr.mxu0 0.0
    %237 = vmatpush1.msra.mxu0 %v219
    %238 = vmatprep.subr.mxu0 0.0
    %239 = vmatpush1.msra.mxu0 %v220
    %240 = vmatprep.subr.mxu0 0.0
    %241 = vmatpush1.msra.mxu0 0.0
    %242 = vmatprep.subr.mxu0 0.0
    %243 = vmatpush1.msra.mxu0 0.0
    %244 = vmatprep.subr.mxu0 0.0
    %245 = vmatpush1.msra.mxu0 0.0
    %246 = vmatprep.subr.mxu0 0.0
    %247 = vmatpush1.msra.mxu0 0.0
    %248 = vmatprep.subr.mxu0 0.0
    %249 = vmatpush1.msra.mxu0 0.0
    %250 = vmatprep.subr.mxu0 0.0
    %251 = vmatpush1.msra.mxu0 0.0
    %252 = vmatprep.subr.mxu0 0.0
    %253 = vmatpush1.msra.mxu0 0.0
    %254 = vmatprep.subr.mxu0 0.0
    %255 = vmatpush1.msra.mxu0 0.0
    %256 = vmatprep.subr.mxu0 0.0
    %257 = vmatpush1.msra.mxu0 0.0
    %258 = vmatprep.subr.mxu0 0.0
    %259 = vmatpush1.msra.mxu0 0.0
    %260 = vmatprep.subr.mxu0 0.0
    %261 = vmatpush1.msra.mxu0 0.0
    %262 = vmatprep.subr.mxu0 0.0
    %263 = vmatpush1.msra.mxu0 0.0
    %264 = vmatprep.subr.mxu0 0.0
    %265 = vmatpush1.msra.mxu0 0.0
    %266 = vmatprep.subr.mxu0 0.0
    %267 = vmatpush1.msra.mxu0 0.0
    %268 = vmatprep.subr.mxu0 0.0
    %269 = vmatpush1.msra.mxu0 0.0
    %270 = vmatprep.subr.mxu0 0.0
    %271 = vmatpush1.msra.mxu0 0.0
    %272 = vmatprep.subr.mxu0 0.0
    %273 = vmatpush1.msra.mxu0 0.0
    %274 = vmatprep.subr.mxu0 0.0
    %275 = vmatpush1.msra.mxu0 0.0
    %276 = vmatprep.subr.mxu0 0.0
    %277 = vmatpush1.msra.mxu0 0.0
    %278 = vmatprep.subr.mxu0 0.0
    %279 = vmatpush1.msra.mxu0 0.0
    %280 = vmatprep.subr.mxu0 0.0
    %281 = vmatpush1.msra.mxu0 0.0
    %282 = vmatprep.subr.mxu0 0.0
    %283 = vmatpush1.msra.mxu0 0.0
    %284 = vmatprep.subr.mxu0 0.0
    %285 = vmatpush1.msra.mxu0 0.0
    %286 = vmatprep.subr.mxu0 0.0
    %287 = vmatpush1.msra.mxu0 0.0
    %288 = vmatprep.subr.mxu0 0.0
    %289 = vmatpush1.msra.mxu0 0.0
    %290 = vmatprep.subr.mxu0 0.0
    %291 = vmatpush1.msra.mxu0 0.0
    %292 = vmatprep.subr.mxu0 0.0
    %293 = vmatpush1.msra.mxu0 0.0
    %294 = vmatprep.subr.mxu0 0.0
    %295 = vmatpush1.msra.mxu0 0.0
    %296 = vmatprep.mubr.f32.mxu0 0.0
    %297 = vmatmul.mubr.f32.gmra.mrb[0].mxu0 %v230
    %v298 = vpop.f32.mrb[0].mxu0
    %v299 = vadd.f32 %v226, %v298
    %v300 = vpop.f32.mrb[0].mxu0
    %301 = vdwg.mxu0
    %v302 = vtanh.pop %v299
    %v303 = vld [vmem:[%s7] sm:$0xff]
    %v304 = vld [vmem:[%s7 + $0x8] sm:$0xff]
    %v305 = vld [vmem:[%s7 + $0x10] sm:$0xff]
    %v306 = vld [vmem:[%s7 + $0x18] sm:$0xff]
    %v307 = vld [vmem:[%s9] sm:$0x1]
    %v309 = vlaneseq
    %v310 = vshrl.u32 %v309, 7
    %v311 = vsub.s32 0, %v310
    %v312 = vrot.slane %v307, %v311
    %v315 = vsel %vm228, %v302, 0
    %317 = vmatprep.subr.mxu0 0.0
    %318 = vmatpush1.msra.mxu0 %v303
    %319 = vmatprep.subr.mxu0 0.0
    %320 = vmatpush1.msra.mxu0 %v304
    %321 = vmatprep.subr.mxu0 0.0
    %322 = vmatpush1.msra.mxu0 %v305
    %323 = vmatprep.subr.mxu0 0.0
    %324 = vmatpush1.msra.mxu0 %v306
    %325 = vmatprep.subr.mxu0 0.0
    %326 = vmatpush1.msra.mxu0 0.0
    %327 = vmatprep.subr.mxu0 0.0
    %328 = vmatpush1.msra.mxu0 0.0
    %329 = vmatprep.subr.mxu0 0.0
    %330 = vmatpush1.msra.mxu0 0.0
    %331 = vmatprep.subr.mxu0 0.0
    %332 = vmatpush1.msra.mxu0 0.0
    %333 = vmatprep.subr.mxu0 0.0
    %334 = vmatpush1.msra.mxu0 0.0
    %335 = vmatprep.subr.mxu0 0.0
    %336 = vmatpush1.msra.mxu0 0.0
    %337 = vmatprep.subr.mxu0 0.0
    %338 = vmatpush1.msra.mxu0 0.0
    %339 = vmatprep.subr.mxu0 0.0
    %340 = vmatpush1.msra.mxu0 0.0
    %341 = vmatprep.subr.mxu0 0.0
    %342 = vmatpush1.msra.mxu0 0.0
    %343 = vmatprep.subr.mxu0 0.0
    %344 = vmatpush1.msra.mxu0 0.0
    %345 = vmatprep.subr.mxu0 0.0
    %346 = vmatpush1.msra.mxu0 0.0
    %347 = vmatprep.subr.mxu0 0.0
    %348 = vmatpush1.msra.mxu0 0.0
    %349 = vmatprep.subr.mxu0 0.0
    %350 = vmatpush1.msra.mxu0 0.0
    %351 = vmatprep.subr.mxu0 0.0
    %352 = vmatpush1.msra.mxu0 0.0
    %353 = vmatprep.subr.mxu0 0.0
    %354 = vmatpush1.msra.mxu0 0.0
    %355 = vmatprep.subr.mxu0 0.0
    %356 = vmatpush1.msra.mxu0 0.0
    %357 = vmatprep.subr.mxu0 0.0
    %358 = vmatpush1.msra.mxu0 0.0
    %359 = vmatprep.subr.mxu0 0.0
    %360 = vmatpush1.msra.mxu0 0.0
    %361 = vmatprep.subr.mxu0 0.0
    %362 = vmatpush1.msra.mxu0 0.0
    %363 = vmatprep.subr.mxu0 0.0
    %364 = vmatpush1.msra.mxu0 0.0
    %365 = vmatprep.subr.mxu0 0.0
    %366 = vmatpush1.msra.mxu0 0.0
    %367 = vmatprep.subr.mxu0 0.0
    %368 = vmatpush1.msra.mxu0 0.0
    %369 = vmatprep.subr.mxu0 0.0
    %370 = vmatpush1.msra.mxu0 0.0
    %371 = vmatprep.subr.mxu0 0.0
    %372 = vmatpush1.msra.mxu0 0.0
    %373 = vmatprep.subr.mxu0 0.0
    %374 = vmatpush1.msra.mxu0 0.0
    %375 = vmatprep.subr.mxu0 0.0
    %376 = vmatpush1.msra.mxu0 0.0
    %377 = vmatprep.subr.mxu0 0.0
    %378 = vmatpush1.msra.mxu0 0.0
    %379 = vmatprep.subr.mxu0 0.0
    %380 = vmatpush1.msra.mxu0 0.0
    %381 = vmatprep.mubr.f32.mxu0 0.0
    %382 = vmatmul.mubr.f32.gmra.mrb[0].mxu0 %v315
    %v383 = vpop.f32.mrb[0].mxu0
    %v384 = vadd.f32 %v312, %v383
    %v385 = vpop.f32.mrb[0].mxu0
    %386 = vdwg.mxu0
    %v387 = vld [vmem:[%s8] sm:$0xff]
    %v388 = vld [vmem:[%s8 + $0x8] sm:$0xff]
    %v389 = vld [vmem:[%s8 + $0x10] sm:$0xff]
    %v390 = vld [vmem:[%s8 + $0x18] sm:$0xff]
    %v391 = vld [vmem:[%s10] sm:$0x1]
    %v393 = vlaneseq
    %v394 = vshrl.u32 %v393, 7
    %v395 = vsub.s32 0, %v394
    %v396 = vrot.slane %v391, %v395
    %398 = vmatprep.subr.mxu0 0.0
    %399 = vmatpush1.msra.mxu0 %v387
    %400 = vmatprep.subr.mxu0 0.0
    %401 = vmatpush1.msra.mxu0 %v388
    %402 = vmatprep.subr.mxu0 0.0
    %403 = vmatpush1.msra.mxu0 %v389
    %404 = vmatprep.subr.mxu0 0.0
    %405 = vmatpush1.msra.mxu0 %v390
    %406 = vmatprep.subr.mxu0 0.0
    %407 = vmatpush1.msra.mxu0 0.0
    %408 = vmatprep.subr.mxu0 0.0
    %409 = vmatpush1.msra.mxu0 0.0
    %410 = vmatprep.subr.mxu0 0.0
    %411 = vmatpush1.msra.mxu0 0.0
    %412 = vmatprep.subr.mxu0 0.0
    %413 = vmatpush1.msra.mxu0 0.0
    %414 = vmatprep.subr.mxu0 0.0
    %415 = vmatpush1.msra.mxu0 0.0
    %416 = vmatprep.subr.mxu0 0.0
    %417 = vmatpush1.msra.mxu0 0.0
    %418 = vmatprep.subr.mxu0 0.0
    %419 = vmatpush1.msra.mxu0 0.0
    %420 = vmatprep.subr.mxu0 0.0
    %421 = vmatpush1.msra.mxu0 0.0
    %422 = vmatprep.subr.mxu0 0.0
    %423 = vmatpush1.msra.mxu0 0.0
    %424 = vmatprep.subr.mxu0 0.0
    %425 = vmatpush1.msra.mxu0 0.0
    %426 = vmatprep.subr.mxu0 0.0
    %427 = vmatpush1.msra.mxu0 0.0
    %428 = vmatprep.subr.mxu0 0.0
    %429 = vmatpush1.msra.mxu0 0.0
    %430 = vmatprep.subr.mxu0 0.0
    %431 = vmatpush1.msra.mxu0 0.0
    %432 = vmatprep.subr.mxu0 0.0
    %433 = vmatpush1.msra.mxu0 0.0
    %434 = vmatprep.subr.mxu0 0.0
    %435 = vmatpush1.msra.mxu0 0.0
    %436 = vmatprep.subr.mxu0 0.0
    %437 = vmatpush1.msra.mxu0 0.0
    %438 = vmatprep.subr.mxu0 0.0
    %439 = vmatpush1.msra.mxu0 0.0
    %440 = vmatprep.subr.mxu0 0.0
    %441 = vmatpush1.msra.mxu0 0.0
    %442 = vmatprep.subr.mxu0 0.0
    %443 = vmatpush1.msra.mxu0 0.0
    %444 = vmatprep.subr.mxu0 0.0
    %445 = vmatpush1.msra.mxu0 0.0
    %446 = vmatprep.subr.mxu0 0.0
    %447 = vmatpush1.msra.mxu0 0.0
    %448 = vmatprep.subr.mxu0 0.0
    %449 = vmatpush1.msra.mxu0 0.0
    %450 = vmatprep.subr.mxu0 0.0
    %451 = vmatpush1.msra.mxu0 0.0
    %452 = vmatprep.subr.mxu0 0.0
    %453 = vmatpush1.msra.mxu0 0.0
    %454 = vmatprep.subr.mxu0 0.0
    %455 = vmatpush1.msra.mxu0 0.0
    %456 = vmatprep.subr.mxu0 0.0
    %457 = vmatpush1.msra.mxu0 0.0
    %458 = vmatprep.subr.mxu0 0.0
    %459 = vmatpush1.msra.mxu0 0.0
    %460 = vmatprep.subr.mxu0 0.0
    %461 = vmatpush1.msra.mxu0 0.0
    %462 = vmatprep.mubr.f32.mxu0 0.0
    %463 = vmatmul.mubr.f32.gmra.mrb[0].mxu0 %v315
    %v464 = vpop.f32.mrb[0].mxu0
    %v465 = vadd.f32 %v396, %v464
    %v466 = vpop.f32.mrb[0].mxu0
    %467 = vdwg.mxu0
    %v468 = vld [vmem:[#allocation2] sm:$0x3]
    %v469 = vld [vmem:[#allocation10] sm:$0xff]
    %v470 = vld [vmem:[#allocation10 + $0x8] sm:$0xff]
    %v471 = vld [vmem:[#allocation10 + $0x10] sm:$0xf]
    %vm472 = vcmask 162816
    %v474 = vsel %vm472, %v468, 0
    %vm476 = vcmask 1043456
    %v478 = vsel %vm476, %v471, 0
    %480 = vmatprep.subr.mxu0 0.0
    %481 = vmatpush1.msra.mxu0 %v469
    %482 = vmatprep.subr.mxu0 0.0
    %483 = vmatpush1.msra.mxu0 %v470
    %484 = vmatprep.subr.mxu0 0.0
    %485 = vmatpush1.msra.mxu0 %v478
    %486 = vmatprep.subr.mxu0 0.0
    %487 = vmatpush1.msra.mxu0 0.0
    %488 = vmatprep.subr.mxu0 0.0
    %489 = vmatpush1.msra.mxu0 0.0
    %490 = vmatprep.subr.mxu0 0.0
    %491 = vmatpush1.msra.mxu0 0.0
    %492 = vmatprep.subr.mxu0 0.0
    %493 = vmatpush1.msra.mxu0 0.0
    %494 = vmatprep.subr.mxu0 0.0
    %495 = vmatpush1.msra.mxu0 0.0
    %496 = vmatprep.subr.mxu0 0.0
    %497 = vmatpush1.msra.mxu0 0.0
    %498 = vmatprep.subr.mxu0 0.0
    %499 = vmatpush1.msra.mxu0 0.0
    %500 = vmatprep.subr.mxu0 0.0
    %501 = vmatpush1.msra.mxu0 0.0
    %502 = vmatprep.subr.mxu0 0.0
    %503 = vmatpush1.msra.mxu0 0.0
    %504 = vmatprep.subr.mxu0 0.0
    %505 = vmatpush1.msra.mxu0 0.0
    %506 = vmatprep.subr.mxu0 0.0
    %507 = vmatpush1.msra.mxu0 0.0
    %508 = vmatprep.subr.mxu0 0.0
    %509 = vmatpush1.msra.mxu0 0.0
    %510 = vmatprep.subr.mxu0 0.0
    %511 = vmatpush1.msra.mxu0 0.0
    %512 = vmatprep.subr.mxu0 0.0
    %513 = vmatpush1.msra.mxu0 0.0
    %514 = vmatprep.subr.mxu0 0.0
    %515 = vmatpush1.msra.mxu0 0.0
    %516 = vmatprep.subr.mxu0 0.0
    %517 = vmatpush1.msra.mxu0 0.0
    %518 = vmatprep.subr.mxu0 0.0
    %519 = vmatpush1.msra.mxu0 0.0
    %520 = vmatprep.subr.mxu0 0.0
    %521 = vmatpush1.msra.mxu0 0.0
    %522 = vmatprep.subr.mxu0 0.0
    %523 = vmatpush1.msra.mxu0 0.0
    %524 = vmatprep.subr.mxu0 0.0
    %525 = vmatpush1.msra.mxu0 0.0
    %526 = vmatprep.subr.mxu0 0.0
    %527 = vmatpush1.msra.mxu0 0.0
    %528 = vmatprep.subr.mxu0 0.0
    %529 = vmatpush1.msra.mxu0 0.0
    %530 = vmatprep.subr.mxu0 0.0
    %531 = vmatpush1.msra.mxu0 0.0
    %532 = vmatprep.subr.mxu0 0.0
    %533 = vmatpush1.msra.mxu0 0.0
    %534 = vmatprep.subr.mxu0 0.0
    %535 = vmatpush1.msra.mxu0 0.0
    %536 = vmatprep.subr.mxu0 0.0
    %537 = vmatpush1.msra.mxu0 0.0
    %538 = vmatprep.subr.mxu0 0.0
    %539 = vmatpush1.msra.mxu0 0.0
    %540 = vmatprep.subr.mxu0 0.0
    %541 = vmatpush1.msra.mxu0 0.0
    %542 = vmatprep.subr.mxu0 0.0
    %543 = vmatpush1.msra.mxu0 0.0
    %544 = vmatprep.mubr.f32.mxu0 0.0
    %545 = vmatmul.mubr.f32.gmra.mrb[0].mxu0 %v474
    %v546 = vpop.f32.mrb[0].mxu0
    %v547 = vadd.f32 0.0, %v546
    %v548 = vpop.f32.mrb[0].mxu0
    %549 = vdwg.mxu0
    %v550 = vadd.f32 %v384, %v547
    %v551 = vld [vmem:[#allocation11] sm:$0xff]
    %v552 = vld [vmem:[#allocation11 + $0x8] sm:$0xff]
    %v553 = vld [vmem:[#allocation11 + $0x10] sm:$0xf]
    %v555 = vsel %vm476, %v553, 0
    %557 = vmatprep.subr.mxu0 0.0
    %558 = vmatpush1.msra.mxu0 %v551
    %559 = vmatprep.subr.mxu0 0.0
    %560 = vmatpush1.msra.mxu0 %v552
    %561 = vmatprep.subr.mxu0 0.0
    %562 = vmatpush1.msra.mxu0 %v555
    %563 = vmatprep.subr.mxu0 0.0
    %564 = vmatpush1.msra.mxu0 0.0
    %565 = vmatprep.subr.mxu0 0.0
    %566 = vmatpush1.msra.mxu0 0.0
    %567 = vmatprep.subr.mxu0 0.0
    %568 = vmatpush1.msra.mxu0 0.0
    %569 = vmatprep.subr.mxu0 0.0
    %570 = vmatpush1.msra.mxu0 0.0
    %571 = vmatprep.subr.mxu0 0.0
    %572 = vmatpush1.msra.mxu0 0.0
    %573 = vmatprep.subr.mxu0 0.0
    %574 = vmatpush1.msra.mxu0 0.0
    %575 = vmatprep.subr.mxu0 0.0
    %576 = vmatpush1.msra.mxu0 0.0
    %577 = vmatprep.subr.mxu0 0.0
    %578 = vmatpush1.msra.mxu0 0.0
    %579 = vmatprep.subr.mxu0 0.0
    %580 = vmatpush1.msra.mxu0 0.0
    %581 = vmatprep.subr.mxu0 0.0
    %582 = vmatpush1.msra.mxu0 0.0
    %583 = vmatprep.subr.mxu0 0.0
    %584 = vmatpush1.msra.mxu0 0.0
    %585 = vmatprep.subr.mxu0 0.0
    %586 = vmatpush1.msra.mxu0 0.0
    %587 = vmatprep.subr.mxu0 0.0
    %588 = vmatpush1.msra.mxu0 0.0
    %589 = vmatprep.subr.mxu0 0.0
    %590 = vmatpush1.msra.mxu0 0.0
    %591 = vmatprep.subr.mxu0 0.0
    %592 = vmatpush1.msra.mxu0 0.0
    %593 = vmatprep.subr.mxu0 0.0
    %594 = vmatpush1.msra.mxu0 0.0
    %595 = vmatprep.subr.mxu0 0.0
    %596 = vmatpush1.msra.mxu0 0.0
    %597 = vmatprep.subr.mxu0 0.0
    %598 = vmatpush1.msra.mxu0 0.0
    %599 = vmatprep.subr.mxu0 0.0
    %600 = vmatpush1.msra.mxu0 0.0
    %601 = vmatprep.subr.mxu0 0.0
    %602 = vmatpush1.msra.mxu0 0.0
    %603 = vmatprep.subr.mxu0 0.0
    %604 = vmatpush1.msra.mxu0 0.0
    %605 = vmatprep.subr.mxu0 0.0
    %606 = vmatpush1.msra.mxu0 0.0
    %607 = vmatprep.subr.mxu0 0.0
    %608 = vmatpush1.msra.mxu0 0.0
    %609 = vmatprep.subr.mxu0 0.0
    %610 = vmatpush1.msra.mxu0 0.0
    %611 = vmatprep.subr.mxu0 0.0
    %612 = vmatpush1.msra.mxu0 0.0
    %613 = vmatprep.subr.mxu0 0.0
    %614 = vmatpush1.msra.mxu0 0.0
    %615 = vmatprep.subr.mxu0 0.0
    %616 = vmatpush1.msra.mxu0 0.0
    %617 = vmatprep.subr.mxu0 0.0
    %618 = vmatpush1.msra.mxu0 0.0
    %619 = vmatprep.subr.mxu0 0.0
    %620 = vmatpush1.msra.mxu0 0.0
    %621 = vmatprep.mubr.f32.mxu0 0.0
    %622 = vmatmul.mubr.f32.gmra.mrb[0].mxu0 %v474
    %v623 = vpop.f32.mrb[0].mxu0
    %v624 = vadd.f32 0.0, %v623
    %v625 = vpop.f32.mrb[0].mxu0
    %626 = vdwg.mxu0
    %v627 = vadd.f32 %v465, %v624
    %v628 = vld [vmem:[#allocation5] sm:$0x3]
    %v629 = vld [vmem:[%s13] sm:$0xf]
    %vm630 = vcmask 31744
    %v632 = vsel %vm630, %v628, 0
    %v635 = vsel %vm476, %v629, 0
    %637 = vmatprep.subr.mxu0 0.0
    %638 = vmatpush1.msra.mxu0 %v635
    %639 = vmatprep.subr.mxu0 0.0
    %640 = vmatpush1.msra.mxu0 0.0
    %641 = vmatprep.subr.mxu0 0.0
    %642 = vmatpush1.msra.mxu0 0.0
    %643 = vmatprep.subr.mxu0 0.0
    %644 = vmatpush1.msra.mxu0 0.0
    %645 = vmatprep.subr.mxu0 0.0
    %646 = vmatpush1.msra.mxu0 0.0
    %647 = vmatprep.subr.mxu0 0.0
    %648 = vmatpush1.msra.mxu0 0.0
    %649 = vmatprep.subr.mxu0 0.0
    %650 = vmatpush1.msra.mxu0 0.0
    %651 = vmatprep.subr.mxu0 0.0
    %652 = vmatpush1.msra.mxu0 0.0
    %653 = vmatprep.subr.mxu0 0.0
    %654 = vmatpush1.msra.mxu0 0.0
    %655 = vmatprep.subr.mxu0 0.0
    %656 = vmatpush1.msra.mxu0 0.0
    %657 = vmatprep.subr.mxu0 0.0
    %658 = vmatpush1.msra.mxu0 0.0
    %659 = vmatprep.subr.mxu0 0.0
    %660 = vmatpush1.msra.mxu0 0.0
    %661 = vmatprep.subr.mxu0 0.0
    %662 = vmatpush1.msra.mxu0 0.0
    %663 = vmatprep.subr.mxu0 0.0
    %664 = vmatpush1.msra.mxu0 0.0
    %665 = vmatprep.subr.mxu0 0.0
    %666 = vmatpush1.msra.mxu0 0.0
    %667 = vmatprep.subr.mxu0 0.0
    %668 = vmatpush1.msra.mxu0 0.0
    %669 = vmatprep.subr.mxu0 0.0
    %670 = vmatpush1.msra.mxu0 0.0
    %671 = vmatprep.subr.mxu0 0.0
    %672 = vmatpush1.msra.mxu0 0.0
    %673 = vmatprep.subr.mxu0 0.0
    %674 = vmatpush1.msra.mxu0 0.0
    %675 = vmatprep.subr.mxu0 0.0
    %676 = vmatpush1.msra.mxu0 0.0
    %677 = vmatprep.subr.mxu0 0.0
    %678 = vmatpush1.msra.mxu0 0.0
    %679 = vmatprep.subr.mxu0 0.0
    %680 = vmatpush1.msra.mxu0 0.0
    %681 = vmatprep.subr.mxu0 0.0
    %682 = vmatpush1.msra.mxu0 0.0
    %683 = vmatprep.subr.mxu0 0.0
    %684 = vmatpush1.msra.mxu0 0.0
    %685 = vmatprep.subr.mxu0 0.0
    %686 = vmatpush1.msra.mxu0 0.0
    %687 = vmatprep.subr.mxu0 0.0
    %688 = vmatpush1.msra.mxu0 0.0
    %689 = vmatprep.subr.mxu0 0.0
    %690 = vmatpush1.msra.mxu0 0.0
    %691 = vmatprep.subr.mxu0 0.0
    %692 = vmatpush1.msra.mxu0 0.0
    %693 = vmatprep.subr.mxu0 0.0
    %694 = vmatpush1.msra.mxu0 0.0
    %695 = vmatprep.subr.mxu0 0.0
    %696 = vmatpush1.msra.mxu0 0.0
    %697 = vmatprep.subr.mxu0 0.0
    %698 = vmatpush1.msra.mxu0 0.0
    %699 = vmatprep.subr.mxu0 0.0
    %700 = vmatpush1.msra.mxu0 0.0
    %701 = vmatprep.mubr.f32.mxu0 0.0
    %702 = vmatmul.mubr.f32.gmra.mrb[0].mxu0 %v632
    %v703 = vpop.f32.mrb[0].mxu0
    %v704 = vadd.f32 0.0, %v703
    %v705 = vpop.f32.mrb[0].mxu0
    %706 = vdwg.mxu0
    %v707 = vadd.f32 %v550, %v704
    %vm708 = vcmask 254976
    %709 = vst.msk [vmem:[#allocation13] sm:$0x3] %vm708, %v707
    %710 = vst.msk [vmem:[#allocation14] sm:$0x3] %vm708, %v627
    // Predicated region
    $region82: #{tpu_custom_call.1} parent=1 // pred_check
      _
    $region83: #{tpu_custom_call.1} parent=1 // pred_check_branch
      %712 = sbr.rel (0) target = $region85
    $region84: #{tpu_custom_call.1} parent=1 // pred_region
      %s714 = ssub.s32 32, 32
      %715 = vsyncadd [#allocation4], %s714
      %s717 = sshll.u32 [#allocation13], 4
      %s718 = int_to_ptr.vmem [resolvable:$true] %s717
      %720 = dma.vmem_to_hbm [thread:$0]  %s718, 32, %s14, [#allocation4]
    $region85: #{tpu_custom_call.1} parent=1 // pred_fallthru
      _
    // Predicated region
    $region86: #{tpu_custom_call.1} parent=1 // pred_check
      _
    $region87: #{tpu_custom_call.1} parent=1 // pred_check_branch
      %722 = sbr.rel (0) target = $region89
    $region88: #{tpu_custom_call.1} parent=1 // pred_region
      %s724 = ssub.s32 32, 32
      %725 = vsyncadd [#allocation15], %s724
      %s727 = sshll.u32 [#allocation14], 4
      %s728 = int_to_ptr.vmem [resolvable:$true] %s727
      %730 = dma.vmem_to_hbm [thread:$0]  %s728, 32, %s15, [#allocation15]
    $region89: #{tpu_custom_call.1} parent=1 // pred_fallthru
      _
    // Predicated region
    $region90: #{tpu_custom_call.1} parent=1 // pred_check
      _
    $region91: #{tpu_custom_call.1} parent=1 // pred_check_branch
      %732 = sbr.rel (0) target = $region93
    $region92: #{tpu_custom_call.1} parent=1 // pred_region
      %733 = dma.done [#allocation4], 32
    $region93: #{tpu_custom_call.1} parent=1 // pred_fallthru
      _
    // Predicated region
    $region94: #{tpu_custom_call.1} parent=1 // pred_check
      _
    $region95: #{tpu_custom_call.1} parent=1 // pred_check_branch
      %735 = sbr.rel (0) target = $region97
    $region96: #{tpu_custom_call.1} parent=1 // pred_region
      %736 = dma.done [#allocation15], 32
    $region97: #{tpu_custom_call.1} parent=1 // pred_fallthru
      _
    %737 = vsyncpa [#allocation3], 1
    %738 = vsyncpa [#allocation6], 1
    %739 = vsyncpa [#allocation9], 1
    %740 = vsyncpa [#allocation12], 1
    %741 = vsyncpa [#allocation4], 1
    %742 = vsyncpa [#allocation15], 1

</llo_original>
